<compile_context>
chip_gen: v7x
topology: tpu7x:2x2x1
jax: 0.10.0
libtpu: 0.0.40
codegen_flags: <defaults>
</compile_context>

<pallas_src>
import functools

import jax
import jax.numpy as jnp
from jax.experimental import pallas as pl
from jax.experimental.pallas import tpu as pltpu


def _self_attention_kernel(x_ref, xq_ref, h_ref, wq_ref, bq_ref, wv_ref,
                           bv_ref, o_ref, *, exp_dtype):
    # x_ref : (ch, P)  bf16  full pixel row (keys) for the current batch elem
    # xq_ref: (ch, tq) f32   query tile of the same row (residual + projection)
    # h_ref : (ch, P)  bf16  precomputed convh row (Wh x + bh)
    xq_f32 = xq_ref[...]
    xq_bf = xq_f32.astype(jnp.bfloat16)

    # Fused query projection q~ = (Wg^T Wf) x_q + (Wg^T bf) : (ch, tq).
    # The remaining f_i . bg (+const) terms of the original f.g score are
    # constant per query i and cancel under softmax shift-invariance.
    q = jnp.dot(wq_ref[...], xq_bf,
                preferred_element_type=jnp.float32) + bq_ref[...]

    # scores_t[j, i] = x[:, j] . q~[:, i]  -> (P, tq)
    # (contract leading dims; "TN" dot_general, flash-attn-bwd style)
    scores_t = jax.lax.dot_general(
        x_ref[...], q.astype(jnp.bfloat16),
        (((0,), (0,)), ((), ())), preferred_element_type=jnp.float32)

    # Numerically-stable softmax over keys j (axis 0); normalization deferred.
    m = jnp.max(scores_t, axis=0, keepdims=True)                # (1, tq) f32
    e = jnp.exp((scores_t - m).astype(exp_dtype))               # (P, tq)
    l = jnp.sum(e.astype(jnp.float32), axis=0, keepdims=True)   # (1, tq) f32

    # Unnormalized attention-weighted values: (ch, P) @ (P, tq) -> (ch, tq),
    # then scale columns by 1/l on the EUP (approx reciprocal).
    eh = jnp.dot(h_ref[...], e.astype(jnp.bfloat16),
                 preferred_element_type=jnp.float32)
    ah = eh * pl.reciprocal(l, approx=True)

    # convv with gamma already folded into the weights/bias by the wrapper.
    v = jnp.dot(wv_ref[...], ah.astype(jnp.bfloat16),
                preferred_element_type=jnp.float32) + bv_ref[...]

    # Residual in f32; output store is lane-dense (last dim = tq, mult of 128).
    o_ref[...] = xq_f32 + v


def _pad_to(a, axis, mult):
    pad = (-a.shape[axis]) % mult
    if pad == 0:
        return a
    widths = [(0, 0)] * a.ndim
    widths[axis] = (0, pad)
    return jnp.pad(a, widths)


def _vmem_footprint(chp, P, tq):
    rows = 2 * 2 * (chp * P * 2)        # x(bf16) + h(bf16) rows, double-buffered
    tiles = 2 * 2 * (chp * tq * 4)      # f32 query tile + f32 out tile, x2 bufs
    weights = 2 * (2 * chp * chp * 2 + 2 * chp * 4)
    inter = 10 * P * tq + 24 * chp * tq  # scores_t + e (+bf16 copy) + small tiles
    return rows + tiles + weights + inter


def self_attention_pallas(x_nchw, params, *, tq=None):
    bs, ch, w, h = x_nchw.shape
    P = w * h

    # Pad channels to a sublane multiple (8); padded channels are identically
    # zero through every stage and are sliced off at the end.
    chp = ch + ((-ch) % 8)

    # NCHW -> (B, C, P): pure reshape (matches torch .view(bs, ch, h*w)).
    x_cp = _pad_to(x_nchw.reshape(bs, ch, P).astype(jnp.float32), 1, 8)
    x_bf = x_cp.astype(jnp.bfloat16)        # bf16 key row fed to the kernel

    # ---- wrapper-side parameter glue --------------------------------------
    wf = _pad_to(params["wf"].astype(jnp.float32), 1, 8)      # (ck, chp)
    wg = _pad_to(params["wg"].astype(jnp.float32), 1, 8)      # (ck, chp)
    bf = params["bf"].astype(jnp.float32)                     # (ck,)
    wh = _pad_to(_pad_to(params["wh"].astype(jnp.float32), 0, 8), 1, 8)
    bh = _pad_to(params["bh"].astype(jnp.float32), 0, 8)
    wv = _pad_to(_pad_to(params["wv"].astype(jnp.float32), 0, 8), 1, 8)
    bv = _pad_to(params["bv"].astype(jnp.float32), 0, 8)
    gamma = params["gamma"].reshape(()).astype(jnp.float32)

    # Algebraic fusion of the score path (convf/convg disappear from the hot
    # loop): Wq = Wg^T Wf, bq = Wg^T bf.
    wq = jnp.dot(wg.T, wf, preferred_element_type=jnp.float32)   # (chp, chp)
    bq = jnp.dot(wg.T, bf, preferred_element_type=jnp.float32)   # (chp,)

    # convh hoisted out of the kernel: computed once per batch element here,
    # fed as a bf16 (chp, P) row whose block index is constant across q.
    h_row = (jnp.einsum("oc,bcp->bop", wh, x_cp)
             + bh[None, :, None]).astype(jnp.bfloat16)

    # gamma folded into convv.
    wq_bf = wq.astype(jnp.bfloat16)
    bq_f32 = bq.reshape(chp, 1)
    wv_bf = (gamma * wv).astype(jnp.bfloat16)
    bv_f32 = (gamma * bv).reshape(chp, 1)

    # ---- tile size / VMEM budget -------------------------------------------
    if tq is None:
        budget = 40 * 2**20          # conservative: fits v7x's 64 MiB VMEM
        tq = next((t for t in (512, 256, 128)
                   if P % t == 0 and _vmem_footprint(chp, P, t) <= budget),
                  128 if P % 128 == 0 else P)
        # TODO(synk): for very large P (>= ~8-16K pixels) switch to a
        # key-tiled online-softmax variant; the full (P, tq) score block no
        # longer fits v7x VMEM there.
    if P % tq != 0:
        raise ValueError(f"P={P} must be divisible by tq={tq}")
    nq = P // tq

    vmem_limit = int(min(64 * 2**20,
                         max(32 * 2**20, 1.4 * _vmem_footprint(chp, P, tq))))

    # exp in bf16 only on chips with a bf16 EUP/VPU path (v6e / v7x).
    try:
        kind = jax.devices()[0].device_kind.lower()
    except Exception:  # pragma: no cover - non-TPU fallback
        kind = ""
    exp_dtype = (jnp.float32
                 if any(v in kind for v in ("v2", "v3", "v4", "v5"))
                 else jnp.bfloat16)

    def rep_spec(shape):
        n = len(shape)
        return pl.BlockSpec(shape, lambda b, q, _n=n: (0,) * _n)

    # Advisory cost hint for the XLA scheduler.
    flops = 4 * bs * P * chp * (chp + P)
    bytes_accessed = (bs * chp * P * (2 + 2 + 4 + 4)        # x_bf + h + xq + out
                      + 2 * (wq_bf.size + wv_bf.size)
                      + 4 * (bq_f32.size + bv_f32.size))

    out = pl.pallas_call(
        functools.partial(_self_attention_kernel, exp_dtype=exp_dtype),
        out_shape=jax.ShapeDtypeStruct((bs, chp, P), jnp.float32),
        grid=(bs, nq),
        in_specs=[
            # bf16 key row; block index constant across q -> DMA'd once per b.
            pl.BlockSpec((pl.Squeezed(), chp, P), lambda b, q: (b, 0, 0)),
            # f32 query tile (exact residual + query-projection input).
            pl.BlockSpec((pl.Squeezed(), chp, tq), lambda b, q: (b, 0, q)),
            # bf16 precomputed convh row; constant across q.
            pl.BlockSpec((pl.Squeezed(), chp, P), lambda b, q: (b, 0, 0)),
            rep_spec((chp, chp)), rep_spec((chp, 1)),   # fused score projection
            rep_spec((chp, chp)), rep_spec((chp, 1)),   # gamma-folded convv
        ],
        out_specs=pl.BlockSpec((pl.Squeezed(), chp, tq), lambda b, q: (b, 0, q)),
        compiler_params=pltpu.CompilerParams(
            dimension_semantics=("parallel", "parallel"),
            vmem_limit_bytes=vmem_limit),
        cost_estimate=pl.CostEstimate(
            flops=flops, transcendentals=bs * P * P,
            bytes_accessed=bytes_accessed),
    )(x_bf, x_cp, h_row, wq_bf, bq_f32, wv_bf, bv_f32)

    # (B, Cpad, P) -> NCHW: slice channel padding, pure reshape (no transpose).
    return out[:, :ch, :].reshape(bs, ch, w, h)


def self_attention_reference(x, params):
    """Pure-JAX mirror of the PyTorch forward, for validation."""
    bs, ch, w, h = x.shape
    P = w * h
    xc = x.reshape(bs, ch, P)

    def conv1x1(x_cp, W, b):
        return jnp.einsum("oc,bcp->bop", W, x_cp) + b[None, :, None]

    f = conv1x1(xc, params["wf"], params["bf"])                 # (bs, ck, P)
    g = conv1x1(xc, params["wg"], params["bg"])                 # (bs, ck, P)
    att = jnp.einsum("bci,bcj->bij", f, g)                      # (bs, P, P)
    att = jax.nn.softmax(att, axis=-1)
    att_t = jnp.transpose(att, (0, 2, 1))
    hh = conv1x1(xc, params["wh"], params["bh"])                # (bs, ch, P)
    ah = jnp.einsum("bci,bij->bcj", hh, att_t)                  # (bs, ch, P)
    v = conv1x1(ah, params["wv"], params["bv"]).reshape(bs, ch, w, h)
    return x + params["gamma"].reshape(()) * v


def init_params(key, in_ch, k=8):
    ck = in_ch // k
    keys = jax.random.split(key, 8)

    def conv_init(kw, kb, cout, cin):
        bound = 1.0 / jnp.sqrt(cin)
        w = jax.random.uniform(kw, (cout, cin), jnp.float32, -bound, bound)
        b = jax.random.uniform(kb, (cout,), jnp.float32, -bound, bound)
        return w, b

    wf, bf = conv_init(keys[0], keys[1], ck, in_ch)
    wg, bg = conv_init(keys[2], keys[3], ck, in_ch)
    wh, bh = conv_init(keys[4], keys[5], in_ch, in_ch)
    wv, bv = conv_init(keys[6], keys[7], in_ch, in_ch)
    # Module __init__ sets gamma = 0 (output == x identically); use a nonzero
    # deterministic value so the attention path is actually exercised/verified.
    gamma = jnp.array([0.5], jnp.float32)
    # self.maxpool from __init__ is unused in forward() -> not implemented.
    return dict(wf=wf, bf=bf, wg=wg, bg=bg, wh=wh, bh=bh, wv=wv, bv=bv,
                gamma=gamma)


if __name__ == "__main__":
    key = jax.random.PRNGKey(0)
    kx, kp = jax.random.split(key)

    bs, ch, spatial, k = 2, 32, 16, 8          # in_ch // k = 4, P = 256
    x = jax.random.normal(kx, (bs, ch, spatial, spatial), jnp.float32)
    params = init_params(kp, ch, k)

    # tq=128 -> grid (bs, 2): exercises the query-tiled, two-parallel-axis path.
    out = jax.block_until_ready(self_attention_pallas(x, params, tq=128))
    ref = jax.block_until_ready(self_attention_reference(x, params))

    assert out.shape == x.shape and out.dtype == jnp.float32
    max_err = jnp.max(jnp.abs(out - ref))
    # bf16 MXU operands / bf16 exp (f32 accumulation, f32 residual) ->
    # ~1e-2-level error vs the all-f32 reference.
    assert jnp.allclose(out, ref, rtol=2e-2, atol=2e-2), (
        f"max abs err = {max_err}")

    print("KERNEL_OK")
</pallas_src>

<mosaic_0001>
module attributes {stable_mosaic.version = 11 : i64} {
  func.func @_self_attention_kernel(%arg0: i32, %arg1: i32, %arg2: memref<1x32x256xbf16, #tpu.memory_space<vmem>>, %arg3: memref<1x32x128xf32, #tpu.memory_space<vmem>>, %arg4: memref<1x32x256xbf16, #tpu.memory_space<vmem>>, %arg5: memref<32x32xbf16, #tpu.memory_space<vmem>>, %arg6: memref<32x1xf32, #tpu.memory_space<vmem>>, %arg7: memref<32x32xbf16, #tpu.memory_space<vmem>>, %arg8: memref<32x1xf32, #tpu.memory_space<vmem>>, %arg9: memref<1x32x128xf32, #tpu.memory_space<vmem>>) attributes {dimension_semantics = [#tpu.dimension_semantics<parallel>, #tpu.dimension_semantics<parallel>], iteration_bounds = array<i64: 2, 2>, scalar_prefetch = 0 : i64, scratch_operands = 0 : i64, tpu.core_type = #tpu.core_type<tc>, window_params = [{transform_indices = @transform_0, window_bounds = array<i64: 1, 32, 256>}, {transform_indices = @transform_1, window_bounds = array<i64: 1, 32, 128>}, {transform_indices = @transform_2, window_bounds = array<i64: 1, 32, 256>}, {pipeline_mode = #tpu.pipeline_mode<synchronous>, transform_indices = @transform_3, window_bounds = array<i64: 32, 32>}, {pipeline_mode = #tpu.pipeline_mode<synchronous>, transform_indices = @transform_4, window_bounds = array<i64: 32, 1>}, {pipeline_mode = #tpu.pipeline_mode<synchronous>, transform_indices = @transform_5, window_bounds = array<i64: 32, 32>}, {pipeline_mode = #tpu.pipeline_mode<synchronous>, transform_indices = @transform_6, window_bounds = array<i64: 32, 1>}, {transform_indices = @transform_7, window_bounds = array<i64: 1, 32, 128>}]} {
    %c0 = arith.constant 0 : index
    %c0_0 = arith.constant 0 : index
    %c0_1 = arith.constant 0 : index
    %0 = vector.load %arg3[%c0, %c0_0, %c0_1] : memref<1x32x128xf32, #tpu.memory_space<vmem>>, vector<1x32x128xf32>
    %1 = vector.shape_cast %0 : vector<1x32x128xf32> to vector<32x128xf32>
    %2 = arith.truncf %1 : vector<32x128xf32> to vector<32x128xbf16>
    %c0_2 = arith.constant 0 : index
    %c0_3 = arith.constant 0 : index
    %3 = vector.load %arg5[%c0_2, %c0_3] : memref<32x32xbf16, #tpu.memory_space<vmem>>, vector<32x32xbf16>
    %cst = arith.constant dense<0.000000e+00> : vector<32x128xf32>
    %4 = tpu.matmul %3, %2, %cst {dimension_numbers = #tpu.dot_dimension_numbers<[1], [0], [0], [1], [0, 0, 1, 1], [], []>} : vector<32x32xbf16>, vector<32x128xbf16>, vector<32x128xf32> -> vector<32x128xf32>
    %c0_4 = arith.constant 0 : index
    %c0_5 = arith.constant 0 : index
    %5 = vector.load %arg6[%c0_4, %c0_5] : memref<32x1xf32, #tpu.memory_space<vmem>>, vector<32x1xf32>
    %6 = vector.broadcast %5 : vector<32x1xf32> to vector<32x128xf32>
    %7 = arith.addf %4, %6 : vector<32x128xf32>
    %c0_6 = arith.constant 0 : index
    %c0_7 = arith.constant 0 : index
    %c0_8 = arith.constant 0 : index
    %8 = vector.load %arg2[%c0_6, %c0_7, %c0_8] : memref<1x32x256xbf16, #tpu.memory_space<vmem>>, vector<1x32x256xbf16>
    %9 = vector.shape_cast %8 : vector<1x32x256xbf16> to vector<32x256xbf16>
    %10 = arith.truncf %7 : vector<32x128xf32> to vector<32x128xbf16>
    %cst_9 = arith.constant dense<0.000000e+00> : vector<256x128xf32>
    %11 = tpu.matmul %9, %10, %cst_9 {dimension_numbers = #tpu.dot_dimension_numbers<[0], [0], [1], [1], [0, 1, 1, 1], [], []>} : vector<32x256xbf16>, vector<32x128xbf16>, vector<256x128xf32> -> vector<256x128xf32>
    %cst_10 = arith.constant dense<0xFF800000> : vector<128xf32>
    %12 = vector.multi_reduction <maximumf>, %11, %cst_10 [0] : vector<256x128xf32> to vector<128xf32>
    %13 = vector.shape_cast %12 : vector<128xf32> to vector<1x128xf32>
    %14 = vector.broadcast %13 : vector<1x128xf32> to vector<256x128xf32>
    %15 = arith.subf %11, %14 : vector<256x128xf32>
    %16 = arith.truncf %15 : vector<256x128xf32> to vector<256x128xbf16>
    %17 = math.exp %16 : vector<256x128xbf16>
    %18 = arith.extf %17 : vector<256x128xbf16> to vector<256x128xf32>
    %cst_11 = arith.constant dense<0.000000e+00> : vector<128xf32>
    %19 = vector.multi_reduction <add>, %18, %cst_11 [0] : vector<256x128xf32> to vector<128xf32>
    %20 = vector.shape_cast %19 : vector<128xf32> to vector<1x128xf32>
    %c0_12 = arith.constant 0 : index
    %c0_13 = arith.constant 0 : index
    %c0_14 = arith.constant 0 : index
    %21 = vector.load %arg4[%c0_12, %c0_13, %c0_14] : memref<1x32x256xbf16, #tpu.memory_space<vmem>>, vector<1x32x256xbf16>
    %22 = vector.shape_cast %21 : vector<1x32x256xbf16> to vector<32x256xbf16>
    %cst_15 = arith.constant dense<0.000000e+00> : vector<32x128xf32>
    %23 = tpu.matmul %22, %17, %cst_15 {dimension_numbers = #tpu.dot_dimension_numbers<[1], [0], [0], [1], [0, 0, 1, 1], [], []>} : vector<32x256xbf16>, vector<256x128xbf16>, vector<32x128xf32> -> vector<32x128xf32>
    %24 = tpu.reciprocal %20 {approx = true} : vector<1x128xf32> -> vector<1x128xf32>
    %25 = vector.broadcast %24 : vector<1x128xf32> to vector<32x128xf32>
    %26 = arith.mulf %23, %25 : vector<32x128xf32>
    %c0_16 = arith.constant 0 : index
    %c0_17 = arith.constant 0 : index
    %27 = vector.load %arg7[%c0_16, %c0_17] : memref<32x32xbf16, #tpu.memory_space<vmem>>, vector<32x32xbf16>
    %28 = arith.truncf %26 : vector<32x128xf32> to vector<32x128xbf16>
    %cst_18 = arith.constant dense<0.000000e+00> : vector<32x128xf32>
    %29 = tpu.matmul %27, %28, %cst_18 {dimension_numbers = #tpu.dot_dimension_numbers<[1], [0], [0], [1], [0, 0, 1, 1], [], []>} : vector<32x32xbf16>, vector<32x128xbf16>, vector<32x128xf32> -> vector<32x128xf32>
    %c0_19 = arith.constant 0 : index
    %c0_20 = arith.constant 0 : index
    %30 = vector.load %arg8[%c0_19, %c0_20] : memref<32x1xf32, #tpu.memory_space<vmem>>, vector<32x1xf32>
    %31 = vector.broadcast %30 : vector<32x1xf32> to vector<32x128xf32>
    %32 = arith.addf %29, %31 : vector<32x128xf32>
    %33 = arith.addf %1, %32 : vector<32x128xf32>
    %c0_21 = arith.constant 0 : index
    %c0_22 = arith.constant 0 : index
    %c0_23 = arith.constant 0 : index
    %34 = vector.load %arg9[%c0_21, %c0_22, %c0_23] : memref<1x32x128xf32, #tpu.memory_space<vmem>>, vector<1x32x128xf32>
    %35 = vector.shape_cast %34 : vector<1x32x128xf32> to vector<32x128xf32>
    %36 = vector.shape_cast %33 : vector<32x128xf32> to vector<1x32x128xf32>
    tpu.vector_store %arg9[%c0_21, %c0_22, %c0_23], %36 {strides = array<i32>} : memref<1x32x128xf32, #tpu.memory_space<vmem>>, vector<1x32x128xf32>,
    return
  }
  func.func @transform_0(%arg0: i32, %arg1: i32) -> (i32, i32, i32) {
    %c0_i32 = arith.constant 0 : i32
    %c0_i32_0 = arith.constant 0 : i32
    %c0_i32_1 = arith.constant 0 : i32
    return %arg0, %c0_i32, %c0_i32_0 : i32, i32, i32
  }
  func.func @transform_1(%arg0: i32, %arg1: i32) -> (i32, i32, i32) {
    %c0_i32 = arith.constant 0 : i32
    %c0_i32_0 = arith.constant 0 : i32
    return %arg0, %c0_i32, %arg1 : i32, i32, i32
  }
  func.func @transform_2(%arg0: i32, %arg1: i32) -> (i32, i32, i32) {
    %c0_i32 = arith.constant 0 : i32
    %c0_i32_0 = arith.constant 0 : i32
    %c0_i32_1 = arith.constant 0 : i32
    return %arg0, %c0_i32, %c0_i32_0 : i32, i32, i32
  }
  func.func @transform_3(%arg0: i32, %arg1: i32) -> (i32, i32) {
    %c0_i32 = arith.constant 0 : i32
    %c0_i32_0 = arith.constant 0 : i32
    %c0_i32_1 = arith.constant 0 : i32
    return %c0_i32, %c0_i32_0 : i32, i32
  }
  func.func @transform_4(%arg0: i32, %arg1: i32) -> (i32, i32) {
    %c0_i32 = arith.constant 0 : i32
    %c0_i32_0 = arith.constant 0 : i32
    %c0_i32_1 = arith.constant 0 : i32
    return %c0_i32, %c0_i32_0 : i32, i32
  }
  func.func @transform_5(%arg0: i32, %arg1: i32) -> (i32, i32) {
    %c0_i32 = arith.constant 0 : i32
    %c0_i32_0 = arith.constant 0 : i32
    %c0_i32_1 = arith.constant 0 : i32
    return %c0_i32, %c0_i32_0 : i32, i32
  }
  func.func @transform_6(%arg0: i32, %arg1: i32) -> (i32, i32) {
    %c0_i32 = arith.constant 0 : i32
    %c0_i32_0 = arith.constant 0 : i32
    %c0_i32_1 = arith.constant 0 : i32
    return %c0_i32, %c0_i32_0 : i32, i32
  }
  func.func @transform_7(%arg0: i32, %arg1: i32) -> (i32, i32, i32) {
    %c0_i32 = arith.constant 0 : i32
    %c0_i32_0 = arith.constant 0 : i32
    return %arg0, %c0_i32, %arg1 : i32, i32, i32
  }
}

</mosaic_0001>

<llo_original>
// kernel: tpu_custom_call.1
$region0: #{tpu_custom_call.1}
  #allocation0 [shape = 'u32[]', space=smem, size = 0x4, offset = 0x4, fixed_abs, tag = 'smem constant byte address 0x4 - core index']
  #allocation1 [shape = 'u32[144,128]{1,0:T(1,128)}', space=vmem, size = 0x12000, scoped, tag = 'internal scratch']
  %s0 = inlined_call_operand.vmem [shape: bf16[2,32,256], index: 0, kind: input, shape index: {}]
  %s1 = inlined_call_operand.hbm [shape: f32[2,32,256], index: 1, kind: input, shape index: {}]
  %s2 = inlined_call_operand.hbm [shape: bf16[2,32,256], index: 2, kind: input, shape index: {}]
  %s3 = inlined_call_operand.hbm [shape: bf16[32,32], index: 3, kind: input, shape index: {}]
  %s4 = inlined_call_operand.vmem [shape: f32[32,1], index: 4, kind: input, shape index: {}]
  %s5 = inlined_call_operand.vmem [shape: bf16[32,32], index: 5, kind: input, shape index: {}]
  %s6 = inlined_call_operand.vmem [shape: f32[32,1], index: 6, kind: input, shape index: {}]
  %s7 = inlined_call_operand.hbm [shape: f32[2,32,256], index: 7, kind: output, shape index: {}]
  %s8 = sld [smem:[#allocation0]]
  $region73: #{tpu_custom_call.1} parent=0
    _
  %s10 = ssub.s32 1, %s8
  %s11 = scalar_select 0, %s10, %s8
  $region1: #{tpu_custom_call.1} parent=0
    #allocation2 [shape = 'u8[32768]{0}', space=vmem, size = 0x8000, scoped, tag = 'input window, operand 1']
    #allocation3 [shape = 's32[2]{0}', space=sflag, size = 0x8, scoped, tag = 'scoped memory for tpu_custom_call.1']
    #allocation4 [shape = 's32[2]{0}', space=sflag, size = 0x8, scoped, tag = 'scoped memory for tpu_custom_call.1']
    #allocation5 [shape = 'u8[32768]{0}', space=vmem, size = 0x8000, scoped, tag = 'input window, operand 2']
    #allocation6 [shape = 's32[2]{0}', space=sflag, size = 0x8, scoped, tag = 'scoped memory for tpu_custom_call.1']
    #allocation7 [shape = 'u8[8192]{0}', space=vmem, size = 0x2000, scoped, tag = 'input window, operand 3, single buffered']
    #allocation8 [shape = 'u8[32768]{0}', space=vmem, size = 0x8000, scoped, tag = 'output window, operand 0']
    %12 = vsyncpa [#allocation3], 0
    %s13 = scalar_lea.sflag [#allocation3], 1
    %14 = vsyncpa %s13, 0
    %15 = vsyncpa [#allocation6], 0
    %s16 = scalar_lea.sflag [#allocation6], 1
    %17 = vsyncpa %s16, 0
    %18 = vsyncpa [#allocation4], 0
    %s19 = scalar_lea.sflag [#allocation4], 1
    %20 = vsyncpa %s19, 0
    loop: start=0, step=1, limit=6
    $region2: #{tpu_custom_call.1} parent=1 // loop_pre_header
      _
    $region3: #{tpu_custom_call.1} parent=1 // loop_header
      %s22 = sphi 0, %s26
      %p23 = scmp.ge.s32.totalorder %s22, 6
      %s29 = sphi 0, %s41
      %s30 = sphi 0, %s37
      %s31 = sphi 0, %s29
      %s32 = sphi 0, %s30
      %s33 = sphi 0, %s31
      %s34 = sphi 0, %s32
      %s44 = sphi 0, %s46
      %s47 = sphi 0, %s44
      %s48 = sphi 0, %s47
      %s64 = sphi 0, %s48
      %s72 = sphi 0, %s74
      %s75 = sphi 0, %s72
      %s76 = sphi 0, %s75
      %s92 = sphi 0, %s76
      %s98 = sphi 0, %s100
      %s101 = sphi 0, %s98
      %s102 = sphi 0, %s101
      %s118 = sphi 0, %s102
      %s122 = sphi 0, %s122
      %s124 = sphi 0, %s122
      %s125 = sphi 0, %s124
      %s139 = sphi 0, %s125
      %s143 = sphi 0, %s143
      %s145 = sphi 0, %s143
      %s146 = sphi 0, %s145
      %s160 = sphi 0, %s146
      %s164 = sphi 0, %s164
      %s166 = sphi 0, %s164
      %s167 = sphi 0, %s166
      %s181 = sphi 0, %s167
      %s185 = sphi 0, %s185
      %s187 = sphi 0, %s185
      %s188 = sphi 0, %s187
      %s202 = sphi 0, %s188
      %s210 = sphi 0, %s212
      %s213 = sphi 0, %s210
      %s214 = sphi 0, %s213
      %s230 = sphi 0, %s214
    $region4: #{tpu_custom_call.1} parent=1 // loop_header_branch
      %25 = sbr.rel (%p23) target = $region8
    $region5: #{tpu_custom_call.1} parent=1 // loop_body
      %s27 = ssub.s32 %s22, 1
      %s28 = ssub.s32 %s22, 2
      %s35 = sadd.s32 1, %s30
      %p36 = scmp.ge.s32.totalorder %s35, 2
      %s37 = scalar_select %p36, 0, %s35
      %s38 = sadd.s32 1, %s29
      %s39 = scalar_select %p36, %s38, %s29
      %p40 = scmp.ge.s32.totalorder %s39, 2
      %s41 = scalar_select %p40, 0, %s39
      %s42 = ssub.s32 %s29, %s41
      %p43 = scmp.eq.s32.totalorder %s42, 0
      %s45 = sadd.s32 %s44, 1
      %s46 = scalar_select %p43, %s44, %s45
      %p49 = pneg %p43
      %p50 = scmp.eq.s32.totalorder %s22, 3
      %p51 = por %p49, %p50
      %p52 = scmp.ne.s32.totalorder %s44, %s47
      %p53 = scmp.eq.s32.totalorder %s22, 0
      %p54 = por %p52, %p53
      %p55 = scmp.ne.s32.totalorder %s44, %s47
      %p56 = scmp.eq.s32.totalorder %s27, 3
      %p57 = por %p55, %p56
      %p58 = scmp.ne.s32.totalorder %s47, %s48
      %p59 = scmp.eq.s32.totalorder %s27, 0
      %p60 = por %p58, %p59
      %p61 = scmp.ne.s32.totalorder %s47, %s48
      %p62 = scmp.eq.s32.totalorder %s28, 3
      %p63 = por %p61, %p62
      %p65 = scmp.ne.s32.totalorder %s48, %s64
      %p66 = scmp.eq.s32.totalorder %s28, 0
      %p67 = por %p65, %p66
      %s68 = ssub.s32 %s29, %s41
      %s69 = ssub.s32 %s30, %s37
      %s70 = sor.u32 %s68, %s69
      %p71 = scmp.eq.s32.totalorder %s70, 0
      %s73 = sadd.s32 %s72, 1
      %s74 = scalar_select %p71, %s72, %s73
      %p77 = pneg %p71
      %p78 = scmp.eq.s32.totalorder %s22, 3
      %p79 = por %p77, %p78
      %p80 = scmp.ne.s32.totalorder %s72, %s75
      %p81 = scmp.eq.s32.totalorder %s22, 0
      %p82 = por %p80, %p81
      %p83 = scmp.ne.s32.totalorder %s72, %s75
      %p84 = scmp.eq.s32.totalorder %s27, 3
      %p85 = por %p83, %p84
      %p86 = scmp.ne.s32.totalorder %s75, %s76
      %p87 = scmp.eq.s32.totalorder %s27, 0
      %p88 = por %p86, %p87
      %p89 = scmp.ne.s32.totalorder %s75, %s76
      %p90 = scmp.eq.s32.totalorder %s28, 3
      %p91 = por %p89, %p90
      %p93 = scmp.ne.s32.totalorder %s76, %s92
      %p94 = scmp.eq.s32.totalorder %s28, 0
      %p95 = por %p93, %p94
      %s96 = ssub.s32 %s29, %s41
      %p97 = scmp.eq.s32.totalorder %s96, 0
      %s99 = sadd.s32 %s98, 1
      %s100 = scalar_select %p97, %s98, %s99
      %p103 = pneg %p97
      %p104 = scmp.eq.s32.totalorder %s22, 3
      %p105 = por %p103, %p104
      %p106 = scmp.ne.s32.totalorder %s98, %s101
      %p107 = scmp.eq.s32.totalorder %s22, 0
      %p108 = por %p106, %p107
      %p109 = scmp.ne.s32.totalorder %s98, %s101
      %p110 = scmp.eq.s32.totalorder %s27, 3
      %p111 = por %p109, %p110
      %p112 = scmp.ne.s32.totalorder %s101, %s102
      %p113 = scmp.eq.s32.totalorder %s27, 0
      %p114 = por %p112, %p113
      %p115 = scmp.ne.s32.totalorder %s101, %s102
      %p116 = scmp.eq.s32.totalorder %s28, 3
      %p117 = por %p115, %p116
      %p119 = scmp.ne.s32.totalorder %s102, %s118
      %p120 = scmp.eq.s32.totalorder %s28, 0
      %p121 = por %p119, %p120
      %s123 = sadd.s32 %s122, 1
      %p126 = scmp.eq.s32.totalorder %s22, 3
      %p127 = scmp.ne.s32.totalorder %s122, %s124
      %p128 = scmp.eq.s32.totalorder %s22, 0
      %p129 = por %p127, %p128
      %p130 = scmp.ne.s32.totalorder %s122, %s124
      %p131 = scmp.eq.s32.totalorder %s27, 3
      %p132 = por %p130, %p131
      %p133 = scmp.ne.s32.totalorder %s124, %s125
      %p134 = scmp.eq.s32.totalorder %s27, 0
      %p135 = por %p133, %p134
      %p136 = scmp.ne.s32.totalorder %s124, %s125
      %p137 = scmp.eq.s32.totalorder %s28, 3
      %p138 = por %p136, %p137
      %p140 = scmp.ne.s32.totalorder %s125, %s139
      %p141 = scmp.eq.s32.totalorder %s28, 0
      %p142 = por %p140, %p141
      %s144 = sadd.s32 %s143, 1
      %p147 = scmp.eq.s32.totalorder %s22, 3
      %p148 = scmp.ne.s32.totalorder %s143, %s145
      %p149 = scmp.eq.s32.totalorder %s22, 0
      %p150 = por %p148, %p149
      %p151 = scmp.ne.s32.totalorder %s143, %s145
      %p152 = scmp.eq.s32.totalorder %s27, 3
      %p153 = por %p151, %p152
      %p154 = scmp.ne.s32.totalorder %s145, %s146
      %p155 = scmp.eq.s32.totalorder %s27, 0
      %p156 = por %p154, %p155
      %p157 = scmp.ne.s32.totalorder %s145, %s146
      %p158 = scmp.eq.s32.totalorder %s28, 3
      %p159 = por %p157, %p158
      %p161 = scmp.ne.s32.totalorder %s146, %s160
      %p162 = scmp.eq.s32.totalorder %s28, 0
      %p163 = por %p161, %p162
      %s165 = sadd.s32 %s164, 1
      %p168 = scmp.eq.s32.totalorder %s22, 3
      %p169 = scmp.ne.s32.totalorder %s164, %s166
      %p170 = scmp.eq.s32.totalorder %s22, 0
      %p171 = por %p169, %p170
      %p172 = scmp.ne.s32.totalorder %s164, %s166
      %p173 = scmp.eq.s32.totalorder %s27, 3
      %p174 = por %p172, %p173
      %p175 = scmp.ne.s32.totalorder %s166, %s167
      %p176 = scmp.eq.s32.totalorder %s27, 0
      %p177 = por %p175, %p176
      %p178 = scmp.ne.s32.totalorder %s166, %s167
      %p179 = scmp.eq.s32.totalorder %s28, 3
      %p180 = por %p178, %p179
      %p182 = scmp.ne.s32.totalorder %s167, %s181
      %p183 = scmp.eq.s32.totalorder %s28, 0
      %p184 = por %p182, %p183
      %s186 = sadd.s32 %s185, 1
      %p189 = scmp.eq.s32.totalorder %s22, 3
      %p190 = scmp.ne.s32.totalorder %s185, %s187
      %p191 = scmp.eq.s32.totalorder %s22, 0
      %p192 = por %p190, %p191
      %p193 = scmp.ne.s32.totalorder %s185, %s187
      %p194 = scmp.eq.s32.totalorder %s27, 3
      %p195 = por %p193, %p194
      %p196 = scmp.ne.s32.totalorder %s187, %s188
      %p197 = scmp.eq.s32.totalorder %s27, 0
      %p198 = por %p196, %p197
      %p199 = scmp.ne.s32.totalorder %s187, %s188
      %p200 = scmp.eq.s32.totalorder %s28, 3
      %p201 = por %p199, %p200
      %p203 = scmp.ne.s32.totalorder %s188, %s202
      %p204 = scmp.eq.s32.totalorder %s28, 0
      %p205 = por %p203, %p204
      %s206 = ssub.s32 %s29, %s41
      %s207 = ssub.s32 %s30, %s37
      %s208 = sor.u32 %s206, %s207
      %p209 = scmp.eq.s32.totalorder %s208, 0
      %s211 = sadd.s32 %s210, 1
      %s212 = scalar_select %p209, %s210, %s211
      %p215 = pneg %p209
      %p216 = scmp.eq.s32.totalorder %s22, 3
      %p217 = por %p215, %p216
      %p218 = scmp.ne.s32.totalorder %s210, %s213
      %p219 = scmp.eq.s32.totalorder %s22, 0
      %p220 = por %p218, %p219
      %p221 = scmp.ne.s32.totalorder %s210, %s213
      %p222 = scmp.eq.s32.totalorder %s27, 3
      %p223 = por %p221, %p222
      %p224 = scmp.ne.s32.totalorder %s213, %s214
      %p225 = scmp.eq.s32.totalorder %s27, 0
      %p226 = por %p224, %p225
      %p227 = scmp.ne.s32.totalorder %s213, %s214
      %p228 = scmp.eq.s32.totalorder %s28, 3
      %p229 = por %p227, %p228
      %p231 = scmp.ne.s32.totalorder %s214, %s230
      %p232 = scmp.eq.s32.totalorder %s28, 0
      %p233 = por %p231, %p232
      %p234 = scmp.le.s32.totalorder 1, %s22
      %p235 = scmp.lt.s32.totalorder %s22, 5
      %p236 = pnand %p234, %p235
      %p237 = pneg %p236
      // Predicated region
      $region9: #{tpu_custom_call.1} parent=5 // pred_check
        _
      $region10: #{tpu_custom_call.1} parent=5 // pred_check_branch
        %239 = sbr.rel (%p236) target = $region12
      $region11: #{tpu_custom_call.1} parent=5 // pred_region
        %s240 = ssub.s32 %s22, 1
        // Predicated region
        $region13: #{tpu_custom_call.1} parent=11 // pred_check
          %p241 = pneg %p135
        $region14: #{tpu_custom_call.1} parent=11 // pred_check_branch
          %243 = sbr.rel (%p241) target = $region16
        $region15: #{tpu_custom_call.1} parent=11 // pred_region
          %s245 = ssub.s32 256, 256
          %246 = vsyncadd [#allocation6], %s245
          %s247 = sshll.u32 [#allocation7], 4
          %s248 = int_to_ptr.vmem [resolvable:$true] %s247
          %253 = dma.hbm_to_vmem [thread:$0]  %s3, 256, %s248, [#allocation6], 64, 64, 4
        $region16: #{tpu_custom_call.1} parent=11 // pred_fallthru
          _
        // Predicated region
        $region17: #{tpu_custom_call.1} parent=11 // pred_check
          %p254 = pneg %p156
        $region18: #{tpu_custom_call.1} parent=11 // pred_check_branch
          %256 = sbr.rel (%p254) target = $region20
        $region19: #{tpu_custom_call.1} parent=11 // pred_region
          _
        $region20: #{tpu_custom_call.1} parent=11 // pred_fallthru
          _
        // Predicated region
        $region21: #{tpu_custom_call.1} parent=11 // pred_check
          %p257 = pneg %p177
        $region22: #{tpu_custom_call.1} parent=11 // pred_check_branch
          %259 = sbr.rel (%p257) target = $region24
        $region23: #{tpu_custom_call.1} parent=11 // pred_region
          _
        $region24: #{tpu_custom_call.1} parent=11 // pred_fallthru
          _
        // Predicated region
        $region25: #{tpu_custom_call.1} parent=11 // pred_check
          %p260 = pneg %p198
        $region26: #{tpu_custom_call.1} parent=11 // pred_check_branch
          %262 = sbr.rel (%p260) target = $region28
        $region27: #{tpu_custom_call.1} parent=11 // pred_region
          _
        $region28: #{tpu_custom_call.1} parent=11 // pred_fallthru
          _
      $region12: #{tpu_custom_call.1} parent=5 // pred_fallthru
        _
      %p263 = scmp.lt.s32.totalorder %s22, 4
      // Predicated region
      $region29: #{tpu_custom_call.1} parent=5 // pred_check
        %p264 = pneg %p263
      $region30: #{tpu_custom_call.1} parent=5 // pred_check_branch
        %266 = sbr.rel (%p264) target = $region32
      $region31: #{tpu_custom_call.1} parent=5 // pred_region
        // Predicated region
        $region33: #{tpu_custom_call.1} parent=31 // pred_check
          %p267 = pneg %p54
        $region34: #{tpu_custom_call.1} parent=31 // pred_check_branch
          %269 = sbr.rel (%p267) target = $region36
        $region35: #{tpu_custom_call.1} parent=31 // pred_region
          %p270 = scmp.lt.s32.totalorder %s29, 1
          %s271 = scalar_select %p270, %s29, 1
          %s272 = smul.addr %s271, 8
          %s273 = smul.addr %s272, 4
          %s274 = scalar_lea.vmem %s0, %s273
        $region36: #{tpu_custom_call.1} parent=31 // pred_fallthru
          _
        // Predicated region
        $region37: #{tpu_custom_call.1} parent=31 // pred_check
          %p275 = pneg %p82
        $region38: #{tpu_custom_call.1} parent=31 // pred_check_branch
          %277 = sbr.rel (%p275) target = $region40
        $region39: #{tpu_custom_call.1} parent=31 // pred_region
          %s278 = sand.u32 %s72, 1
          %s279 = scalar_lea.sflag [#allocation3], %s278
          %s280 = sand.u32 %s72, 1
          %s281 = smul.addr %s280, 32
          %s282 = scalar_lea.vmem [#allocation2], %s281
          %s284 = ssub.s32 512, 512
          %285 = vsyncadd %s279, %s284
          %s286 = smul.addr %s29, 8
          %s287 = sadd.s32 %s30, %s286
          %s288 = smul.addr %s287, 128
          %s289 = scalar_lea.hbm %s1, %s288
          %s290 = sshll.u32 %s282, 4
          %s291 = int_to_ptr.vmem [resolvable:$true] %s290
          %296 = dma.hbm_to_vmem [thread:$0]  %s289, 512, %s291, %s279, 256, 128, 8
        $region40: #{tpu_custom_call.1} parent=31 // pred_fallthru
          _
        // Predicated region
        $region41: #{tpu_custom_call.1} parent=31 // pred_check
          %p297 = pneg %p108
        $region42: #{tpu_custom_call.1} parent=31 // pred_check_branch
          %299 = sbr.rel (%p297) target = $region44
        $region43: #{tpu_custom_call.1} parent=31 // pred_region
          %s300 = sand.u32 %s22, 1
          %s301 = scalar_lea.sflag [#allocation6], %s300
          %s302 = sand.u32 %s98, 1
          %s303 = smul.addr %s302, 32
          %s304 = scalar_lea.vmem [#allocation5], %s303
          %s306 = ssub.s32 512, 512
          %307 = vsyncadd %s301, %s306
          %s308 = smul.addr %s29, 8
          %s309 = smul.addr %s308, 64
          %s310 = scalar_lea.hbm %s2, %s309
          %s311 = sshll.u32 %s304, 4
          %s312 = int_to_ptr.vmem [resolvable:$true] %s311
          %317 = dma.hbm_to_vmem [thread:$0]  %s310, 512, %s312, %s301, 128, 128, 8
        $region44: #{tpu_custom_call.1} parent=31 // pred_fallthru
          _
      $region32: #{tpu_custom_call.1} parent=5 // pred_fallthru
        _
      %p318 = scmp.le.s32.totalorder 1, %s22
      %p319 = scmp.lt.s32.totalorder %s22, 5
      %p320 = pnand %p318, %p319
      %p321 = pneg %p320
      // Predicated region
      $region45: #{tpu_custom_call.1} parent=5 // pred_check
        _
      $region46: #{tpu_custom_call.1} parent=5 // pred_check_branch
        %323 = sbr.rel (%p320) target = $region48
      $region47: #{tpu_custom_call.1} parent=5 // pred_region
        %s324 = ssub.s32 %s22, 1
        %s325 = sand.u32 %s75, 1
        %s326 = scalar_lea.sflag [#allocation3], %s325
        %s327 = sand.u32 %s75, 1
        %s328 = smul.addr %s327, 32
        %s329 = scalar_lea.vmem [#allocation2], %s328
        // Predicated region
        $region49: #{tpu_custom_call.1} parent=47 // pred_check
          %p330 = pneg %p88
        $region50: #{tpu_custom_call.1} parent=47 // pred_check_branch
          %332 = sbr.rel (%p330) target = $region52
        $region51: #{tpu_custom_call.1} parent=47 // pred_region
          %333 = dma.done %s326, 512
        $region52: #{tpu_custom_call.1} parent=47 // pred_fallthru
          _
        %s334 = sand.u32 %s27, 1
        %s335 = scalar_lea.sflag [#allocation6], %s334
        %s336 = sand.u32 %s101, 1
        %s337 = smul.addr %s336, 32
        %s338 = scalar_lea.vmem [#allocation5], %s337
        // Predicated region
        $region53: #{tpu_custom_call.1} parent=47 // pred_check
          %p339 = pneg %p114
        $region54: #{tpu_custom_call.1} parent=47 // pred_check_branch
          %341 = sbr.rel (%p339) target = $region56
        $region55: #{tpu_custom_call.1} parent=47 // pred_region
          %342 = dma.done %s335, 512
        $region56: #{tpu_custom_call.1} parent=47 // pred_fallthru
          _
        // Predicated region
        $region57: #{tpu_custom_call.1} parent=47 // pred_check
          %p343 = pneg %p135
        $region58: #{tpu_custom_call.1} parent=47 // pred_check_branch
          %345 = sbr.rel (%p343) target = $region60
        $region59: #{tpu_custom_call.1} parent=47 // pred_region
          %346 = dma.done [#allocation6], 256
        $region60: #{tpu_custom_call.1} parent=47 // pred_fallthru
          _
        %p347 = scmp.lt.s32.totalorder %s31, 1
        %s348 = scalar_select %p347, %s31, 1
        %s349 = smul.addr %s348, 8
        %s350 = smul.addr %s349, 4
        %s351 = scalar_lea.vmem %s0, %s350
        %p352 = pneg %p60
        %p353 = pneg %p57
        %s354 = sand.u32 %s75, 1
        %s355 = scalar_lea.sflag [#allocation3], %s354
        %s356 = sand.u32 %s75, 1
        %s357 = smul.addr %s356, 32
        %s358 = scalar_lea.vmem [#allocation2], %s357
        %p359 = pneg %p88
        %p360 = pneg %p85
        %s361 = sand.u32 %s27, 1
        %s362 = scalar_lea.sflag [#allocation6], %s361
        %s363 = sand.u32 %s101, 1
        %s364 = smul.addr %s363, 32
        %s365 = scalar_lea.vmem [#allocation5], %s364
        %p366 = pneg %p114
        %p367 = pneg %p111
        %p368 = pneg %p135
        %p369 = pneg %p132
        %p370 = pneg %p156
        %p371 = pneg %p153
        %p372 = pneg %p177
        %p373 = pneg %p174
        %p374 = pneg %p198
        %p375 = pneg %p195
        %p376 = pneg %p226
        %p377 = pneg %p223
        %s378 = sand.u32 %s213, 1
        %s379 = scalar_lea.sflag [#allocation4], %s378
        %s380 = sand.u32 %s213, 1
        %s381 = smul.addr %s380, 32
        %s382 = scalar_lea.vmem [#allocation8], %s381
        %p383 = scmp.lt.s32.totalorder %s31, 1
        %s384 = scalar_select %p383, %s31, 1
        %s385 = smul.addr %s384, 8
        %s386 = smul.addr %s385, 4
        %s387 = scalar_lea.vmem %s0, %s386
        %v389 = vld [vmem:[%s329] sm:$0xff]
        %v390 = vld [vmem:[%s329 + $0x8] sm:$0xff]
        %v391 = vld [vmem:[%s329 + $0x10] sm:$0xff]
        %v392 = vld [vmem:[%s329 + $0x18] sm:$0xff]
        %v393 = vpack.c.bf16 %v390, %v389
        %v394 = vpack.c.bf16 %v392, %v391
        %v395 = vld [vmem:[#allocation7] sm:$0xf]
        %v396 = vld [vmem:[#allocation7 + $0x4] sm:$0xf]
        %v397 = vld [vmem:[#allocation7 + $0x8] sm:$0xf]
        %v398 = vld [vmem:[#allocation7 + $0xc] sm:$0xf]
        %v399 = vld [vmem:[%s4] sm:$0xff]
        %v400 = vld [vmem:[%s4 + $0x8] sm:$0xff]
        %v401 = vld [vmem:[%s4 + $0x10] sm:$0xff]
        %v402 = vld [vmem:[%s4 + $0x18] sm:$0xff]
        %404 = vset.pattern.permute.xlu0 0
        %405 = vperm.xlu0 %404, %v399
        %v406 = vpop.permute.xlu0 %405
        %409 = vset.pattern.permute.xlu0 0
        %410 = vperm.xlu0 %409, %v400
        %v411 = vpop.permute.xlu0 %410
        %414 = vset.pattern.permute.xlu0 0
        %415 = vperm.xlu0 %414, %v401
        %v416 = vpop.permute.xlu0 %415
        %419 = vset.pattern.permute.xlu0 0
        %420 = vperm.xlu0 %419, %v402
        %v421 = vpop.permute.xlu0 %420
        %v427 = vunpack.c.l.b16 %v395
        %v428 = vunpack.c.l.b16 %v396
        %v429 = vunpack.c.l.b16 %v397
        %v430 = vunpack.c.l.b16 %v398
        %v431 = vpack.c.b16 %v428, %v427
        %v432 = vpack.c.b16 %v430, %v429
        %vm433 = vcmask 261120
        %v435 = vsel %vm433, %v431, 0
        %v438 = vsel %vm433, %v432, 0
        %440 = vmatprep.subr.bf16.mxu0 0
        %441 = vmatpush1.bf16.msra.mxu0 %v393
        %442 = vmatprep.subr.bf16.mxu0 0
        %443 = vmatpush1.bf16.msra.mxu0 %v394
        %444 = vmatprep.subr.bf16.mxu0 0
        %445 = vmatpush1.bf16.msra.mxu0 0
        %446 = vmatprep.subr.bf16.mxu0 0
        %447 = vmatpush1.bf16.msra.mxu0 0
        %448 = vmatprep.subr.bf16.mxu0 0
        %449 = vmatpush1.bf16.msra.mxu0 0
        %450 = vmatprep.subr.bf16.mxu0 0
        %451 = vmatpush1.bf16.msra.mxu0 0
        %452 = vmatprep.subr.bf16.mxu0 0
        %453 = vmatpush1.bf16.msra.mxu0 0
        %454 = vmatprep.subr.bf16.mxu0 0
        %455 = vmatpush1.bf16.msra.mxu0 0
        %456 = vmatprep.subr.bf16.mxu0 0
        %457 = vmatpush1.bf16.msra.mxu0 0
        %458 = vmatprep.subr.bf16.mxu0 0
        %459 = vmatpush1.bf16.msra.mxu0 0
        %460 = vmatprep.subr.bf16.mxu0 0
        %461 = vmatpush1.bf16.msra.mxu0 0
        %462 = vmatprep.subr.bf16.mxu0 0
        %463 = vmatpush1.bf16.msra.mxu0 0
        %464 = vmatprep.subr.bf16.mxu0 0
        %465 = vmatpush1.bf16.msra.mxu0 0
        %466 = vmatprep.subr.bf16.mxu0 0
        %467 = vmatpush1.bf16.msra.mxu0 0
        %468 = vmatprep.subr.bf16.mxu0 0
        %469 = vmatpush1.bf16.msra.mxu0 0
        %470 = vmatprep.subr.bf16.mxu0 0
        %471 = vmatpush1.bf16.msra.mxu0 0
        %472 = vmatprep.mubr.bf16.mxu0 0
        %473 = vmatmul.mubr.bf16.gmra.mrb[0].mxu0 %v435
        %v474 = vpop.f32.mrb[0].mxu0
        %v475 = vadd.f32 %v406, %v474
        %v476 = vpop.f32.mrb[0].mxu0
        %v477 = vpop.f32.mrb[0].mxu0
        %v478 = vadd.f32 %v411, %v477
        %v479 = vpop.f32.mrb[0].mxu0
        %480 = vmatprep.mubr.bf16.mxu0 0
        %481 = vmatmul.mubr.bf16.gmra.mrb[0].mxu0 %v438
        %v482 = vpop.f32.mrb[0].mxu0
        %v483 = vadd.f32 %v416, %v482
        %v484 = vpop.f32.mrb[0].mxu0
        %v485 = vpop.f32.mrb[0].mxu0
        %v486 = vadd.f32 %v421, %v485
        %v487 = vpop.f32.mrb[0].mxu0
        %488 = vdwg.mxu0
        %v489 = vld [vmem:[%s387] sm:$0xff]
        %v490 = vld [vmem:[%s387 + $0x8] sm:$0xff]
        %v491 = vld [vmem:[%s387 + $0x10] sm:$0xff]
        %v492 = vld [vmem:[%s387 + $0x18] sm:$0xff]
        %v493 = vpack.c.bf16 %v478, %v475
        %v494 = vpack.c.bf16 %v486, %v483
        %v499 = vunpack.c.l.b16 %v489
        %v500 = vunpack.c.h.b16 %v489
        %v501 = vunpack.c.l.b16 %v490
        %v502 = vunpack.c.h.b16 %v490
        %v503 = vunpack.c.l.b16 %v491
        %v504 = vunpack.c.h.b16 %v491
        %v505 = vunpack.c.l.b16 %v492
        %v506 = vunpack.c.h.b16 %v492
        %v507 = vpack.c.b16 %v501, %v499
        %v508 = vpack.c.b16 %v502, %v500
        %v509 = vpack.c.b16 %v505, %v503
        %v510 = vpack.c.b16 %v506, %v504
        %515 = vxpose.xlu0.c.b16.start [1/8] %v507, 128
        %516 = vxpose.xlu0.c.b16.cont [2/8] %v509, 128
        %517 = vxpose.xlu0.c.b16.cont [3/8] 0, 128
        %518 = vxpose.xlu0.c.b16.cont [4/8] 0, 128
        %519 = vxpose.xlu0.c.b16.cont [5/8] 0, 128
        %520 = vxpose.xlu0.c.b16.cont [6/8] 0, 128
        %521 = vxpose.xlu0.c.b16.cont [7/8] 0, 128
        %522 = vxpose.xlu0.c.b16.end [8/8] 0, 128
        %v523 = vpop.trf.xlu0
        %v524 = vpop.trf.xlu0
        %v525 = vpop.trf.xlu0
        %v526 = vpop.trf.xlu0
        %v527 = vpop.trf.xlu0
        %v528 = vpop.trf.xlu0
        %v529 = vpop.trf.xlu0
        %v530 = vpop.trf.xlu0
        %531 = vxpose.xlu0.c.b16.start [1/8] %v508, 128
        %532 = vxpose.xlu0.c.b16.cont [2/8] %v510, 128
        %533 = vxpose.xlu0.c.b16.cont [3/8] 0, 128
        %534 = vxpose.xlu0.c.b16.cont [4/8] 0, 128
        %535 = vxpose.xlu0.c.b16.cont [5/8] 0, 128
        %536 = vxpose.xlu0.c.b16.cont [6/8] 0, 128
        %537 = vxpose.xlu0.c.b16.cont [7/8] 0, 128
        %538 = vxpose.xlu0.c.b16.end [8/8] 0, 128
        %v539 = vpop.trf.xlu0
        %v540 = vpop.trf.xlu0
        %v541 = vpop.trf.xlu0
        %v542 = vpop.trf.xlu0
        %v543 = vpop.trf.xlu0
        %v544 = vpop.trf.xlu0
        %v545 = vpop.trf.xlu0
        %v546 = vpop.trf.xlu0
        %v548 = vsel %vm433, %v523, 0
        %v551 = vsel %vm433, %v524, 0
        %v554 = vsel %vm433, %v525, 0
        %v557 = vsel %vm433, %v526, 0
        %v560 = vsel %vm433, %v527, 0
        %v563 = vsel %vm433, %v528, 0
        %v566 = vsel %vm433, %v529, 0
        %v569 = vsel %vm433, %v530, 0
        %v572 = vsel %vm433, %v539, 0
        %v575 = vsel %vm433, %v540, 0
        %v578 = vsel %vm433, %v541, 0
        %v581 = vsel %vm433, %v542, 0
        %v584 = vsel %vm433, %v543, 0
        %v587 = vsel %vm433, %v544, 0
        %v590 = vsel %vm433, %v545, 0
        %v593 = vsel %vm433, %v546, 0
        %595 = vmatprep.subr.bf16.mxu0 0
        %596 = vmatpush1.bf16.msra.mxu0 %v493
        %597 = vmatprep.subr.bf16.mxu0 0
        %598 = vmatpush1.bf16.msra.mxu0 %v494
        %599 = vmatprep.subr.bf16.mxu0 0
        %600 = vmatpush1.bf16.msra.mxu0 0
        %601 = vmatprep.subr.bf16.mxu0 0
        %602 = vmatpush1.bf16.msra.mxu0 0
        %603 = vmatprep.subr.bf16.mxu0 0
        %604 = vmatpush1.bf16.msra.mxu0 0
        %605 = vmatprep.subr.bf16.mxu0 0
        %606 = vmatpush1.bf16.msra.mxu0 0
        %607 = vmatprep.subr.bf16.mxu0 0
        %608 = vmatpush1.bf16.msra.mxu0 0
        %609 = vmatprep.subr.bf16.mxu0 0
        %610 = vmatpush1.bf16.msra.mxu0 0
        %611 = vmatprep.subr.bf16.mxu0 0
        %612 = vmatpush1.bf16.msra.mxu0 0
        %613 = vmatprep.subr.bf16.mxu0 0
        %614 = vmatpush1.bf16.msra.mxu0 0
        %615 = vmatprep.subr.bf16.mxu0 0
        %616 = vmatpush1.bf16.msra.mxu0 0
        %617 = vmatprep.subr.bf16.mxu0 0
        %618 = vmatpush1.bf16.msra.mxu0 0
        %619 = vmatprep.subr.bf16.mxu0 0
        %620 = vmatpush1.bf16.msra.mxu0 0
        %621 = vmatprep.subr.bf16.mxu0 0
        %622 = vmatpush1.bf16.msra.mxu0 0
        %623 = vmatprep.subr.bf16.mxu0 0
        %624 = vmatpush1.bf16.msra.mxu0 0
        %625 = vmatprep.subr.bf16.mxu0 0
        %626 = vmatpush1.bf16.msra.mxu0 0
        %627 = vmatprep.mubr.bf16.mxu0 0
        %628 = vmatmul.mubr.bf16.gmra.mrb[0].mxu0 %v548
        %v629 = vpop.f32.mrb[0].mxu0
        %v630 = vadd.f32 0.0, %v629
        %v631 = vpop.f32.mrb[0].mxu0
        %v632 = vpop.f32.mrb[0].mxu0
        %v633 = vadd.f32 0.0, %v632
        %v634 = vpop.f32.mrb[0].mxu0
        %635 = vmatprep.mubr.bf16.mxu0 0
        %636 = vmatmul.mubr.bf16.gmra.mrb[0].mxu0 %v551
        %v637 = vpop.f32.mrb[0].mxu0
        %v638 = vadd.f32 0.0, %v637
        %v639 = vpop.f32.mrb[0].mxu0
        %v640 = vpop.f32.mrb[0].mxu0
        %v641 = vadd.f32 0.0, %v640
        %v642 = vpop.f32.mrb[0].mxu0
        %643 = vmatprep.mubr.bf16.mxu0 0
        %644 = vmatmul.mubr.bf16.gmra.mrb[0].mxu0 %v554
        %v645 = vpop.f32.mrb[0].mxu0
        %v646 = vadd.f32 0.0, %v645
        %v647 = vpop.f32.mrb[0].mxu0
        %v648 = vpop.f32.mrb[0].mxu0
        %v649 = vadd.f32 0.0, %v648
        %v650 = vpop.f32.mrb[0].mxu0
        %651 = vmatprep.mubr.bf16.mxu0 0
        %652 = vmatmul.mubr.bf16.gmra.mrb[0].mxu0 %v557
        %v653 = vpop.f32.mrb[0].mxu0
        %v654 = vadd.f32 0.0, %v653
        %v655 = vpop.f32.mrb[0].mxu0
        %v656 = vpop.f32.mrb[0].mxu0
        %v657 = vadd.f32 0.0, %v656
        %v658 = vpop.f32.mrb[0].mxu0
        %659 = vmatprep.mubr.bf16.mxu0 0
        %660 = vmatmul.mubr.bf16.gmra.mrb[0].mxu0 %v560
        %v661 = vpop.f32.mrb[0].mxu0
        %v662 = vadd.f32 0.0, %v661
        %v663 = vpop.f32.mrb[0].mxu0
        %v664 = vpop.f32.mrb[0].mxu0
        %v665 = vadd.f32 0.0, %v664
        %v666 = vpop.f32.mrb[0].mxu0
        %667 = vmatprep.mubr.bf16.mxu0 0
        %668 = vmatmul.mubr.bf16.gmra.mrb[0].mxu0 %v563
        %v669 = vpop.f32.mrb[0].mxu0
        %v670 = vadd.f32 0.0, %v669
        %v671 = vpop.f32.mrb[0].mxu0
        %v672 = vpop.f32.mrb[0].mxu0
        %v673 = vadd.f32 0.0, %v672
        %v674 = vpop.f32.mrb[0].mxu0
        %675 = vmatprep.mubr.bf16.mxu0 0
        %676 = vmatmul.mubr.bf16.gmra.mrb[0].mxu0 %v566
        %v677 = vpop.f32.mrb[0].mxu0
        %v678 = vadd.f32 0.0, %v677
        %v679 = vpop.f32.mrb[0].mxu0
        %v680 = vpop.f32.mrb[0].mxu0
        %v681 = vadd.f32 0.0, %v680
        %v682 = vpop.f32.mrb[0].mxu0
        %683 = vmatprep.mubr.bf16.mxu0 0
        %684 = vmatmul.mubr.bf16.gmra.mrb[0].mxu0 %v569
        %v685 = vpop.f32.mrb[0].mxu0
        %v686 = vadd.f32 0.0, %v685
        %v687 = vpop.f32.mrb[0].mxu0
        %v688 = vpop.f32.mrb[0].mxu0
        %v689 = vadd.f32 0.0, %v688
        %v690 = vpop.f32.mrb[0].mxu0
        %691 = vmatprep.mubr.bf16.mxu0 0
        %692 = vmatmul.mubr.bf16.gmra.mrb[0].mxu0 %v572
        %v693 = vpop.f32.mrb[0].mxu0
        %v694 = vadd.f32 0.0, %v693
        %v695 = vpop.f32.mrb[0].mxu0
        %v696 = vpop.f32.mrb[0].mxu0
        %v697 = vadd.f32 0.0, %v696
        %v698 = vpop.f32.mrb[0].mxu0
        %699 = vmatprep.mubr.bf16.mxu0 0
        %700 = vmatmul.mubr.bf16.gmra.mrb[0].mxu0 %v575
        %v701 = vpop.f32.mrb[0].mxu0
        %v702 = vadd.f32 0.0, %v701
        %v703 = vpop.f32.mrb[0].mxu0
        %v704 = vpop.f32.mrb[0].mxu0
        %v705 = vadd.f32 0.0, %v704
        %v706 = vpop.f32.mrb[0].mxu0
        %707 = vmatprep.mubr.bf16.mxu0 0
        %708 = vmatmul.mubr.bf16.gmra.mrb[0].mxu0 %v578
        %v709 = vpop.f32.mrb[0].mxu0
        %v710 = vadd.f32 0.0, %v709
        %v711 = vpop.f32.mrb[0].mxu0
        %v712 = vpop.f32.mrb[0].mxu0
        %v713 = vadd.f32 0.0, %v712
        %v714 = vpop.f32.mrb[0].mxu0
        %715 = vmatprep.mubr.bf16.mxu0 0
        %716 = vmatmul.mubr.bf16.gmra.mrb[0].mxu0 %v581
        %v717 = vpop.f32.mrb[0].mxu0
        %v718 = vadd.f32 0.0, %v717
        %v719 = vpop.f32.mrb[0].mxu0
        %v720 = vpop.f32.mrb[0].mxu0
        %v721 = vadd.f32 0.0, %v720
        %v722 = vpop.f32.mrb[0].mxu0
        %723 = vmatprep.mubr.bf16.mxu0 0
        %724 = vmatmul.mubr.bf16.gmra.mrb[0].mxu0 %v584
        %v725 = vpop.f32.mrb[0].mxu0
        %v726 = vadd.f32 0.0, %v725
        %v727 = vpop.f32.mrb[0].mxu0
        %v728 = vpop.f32.mrb[0].mxu0
        %v729 = vadd.f32 0.0, %v728
        %v730 = vpop.f32.mrb[0].mxu0
        %731 = vmatprep.mubr.bf16.mxu0 0
        %732 = vmatmul.mubr.bf16.gmra.mrb[0].mxu0 %v587
        %v733 = vpop.f32.mrb[0].mxu0
        %v734 = vadd.f32 0.0, %v733
        %v735 = vpop.f32.mrb[0].mxu0
        %v736 = vpop.f32.mrb[0].mxu0
        %v737 = vadd.f32 0.0, %v736
        %v738 = vpop.f32.mrb[0].mxu0
        %739 = vmatprep.mubr.bf16.mxu0 0
        %740 = vmatmul.mubr.bf16.gmra.mrb[0].mxu0 %v590
        %v741 = vpop.f32.mrb[0].mxu0
        %v742 = vadd.f32 0.0, %v741
        %v743 = vpop.f32.mrb[0].mxu0
        %v744 = vpop.f32.mrb[0].mxu0
        %v745 = vadd.f32 0.0, %v744
        %v746 = vpop.f32.mrb[0].mxu0
        %747 = vmatprep.mubr.bf16.mxu0 0
        %748 = vmatmul.mubr.bf16.gmra.mrb[0].mxu0 %v593
        %v749 = vpop.f32.mrb[0].mxu0
        %v750 = vadd.f32 0.0, %v749
        %v751 = vpop.f32.mrb[0].mxu0
        %v752 = vpop.f32.mrb[0].mxu0
        %v753 = vadd.f32 0.0, %v752
        %v754 = vpop.f32.mrb[0].mxu0
        %755 = vdwg.mxu0
        %v756 = vmax.f32 %v630, %v646
        %v757 = vmax.f32 %v633, %v649
        %v758 = vmax.f32 %v638, %v654
        %v759 = vmax.f32 %v641, %v657
        %v760 = vmax.f32 %v756, %v662
        %v761 = vmax.f32 %v757, %v665
        %v762 = vmax.f32 %v758, %v670
        %v763 = vmax.f32 %v759, %v673
        %v764 = vmax.f32 %v760, %v678
        %v765 = vmax.f32 %v761, %v681
        %v766 = vmax.f32 %v762, %v686
        %v767 = vmax.f32 %v763, %v689
        %v768 = vmax.f32 %v764, %v694
        %v769 = vmax.f32 %v765, %v697
        %v770 = vmax.f32 %v766, %v702
        %v771 = vmax.f32 %v767, %v705
        %v772 = vmax.f32 %v768, %v710
        %v773 = vmax.f32 %v769, %v713
        %v774 = vmax.f32 %v770, %v718
        %v775 = vmax.f32 %v771, %v721
        %v776 = vmax.f32 %v772, %v726
        %v777 = vmax.f32 %v773, %v729
        %v778 = vmax.f32 %v774, %v734
        %v779 = vmax.f32 %v775, %v737
        %v780 = vmax.f32 %v776, %v742
        %v781 = vmax.f32 %v777, %v745
        %v782 = vmax.f32 %v778, %v750
        %v783 = vmax.f32 %v779, %v753
        %v784 = vmax.f32 %v780, %v781
        %v785 = vmax.f32 %v782, %v783
        %v786 = vmax.f32 %v784, %v785
        %v787 = vrot.slane %v786, 4
        %v788 = vmax.f32 %v786, %v787
        %v789 = vrot.slane %v788, 2
        %v790 = vmax.f32 %v788, %v789
        %v791 = vrot.slane %v790, 1
        %v792 = vmax.f32 %v790, %v791
        %v793 = vsub.f32 %v630, %v792
        %v794 = vsub.f32 %v633, %v792
        %v795 = vsub.f32 %v638, %v792
        %v796 = vsub.f32 %v641, %v792
        %v797 = vsub.f32 %v646, %v792
        %v798 = vsub.f32 %v649, %v792
        %v799 = vsub.f32 %v654, %v792
        %v800 = vsub.f32 %v657, %v792
        %v801 = vsub.f32 %v662, %v792
        %v802 = vsub.f32 %v665, %v792
        %v803 = vsub.f32 %v670, %v792
        %v804 = vsub.f32 %v673, %v792
        %v805 = vsub.f32 %v678, %v792
        %v806 = vsub.f32 %v681, %v792
        %v807 = vsub.f32 %v686, %v792
        %v808 = vsub.f32 %v689, %v792
        %v809 = vsub.f32 %v694, %v792
        %v810 = vsub.f32 %v697, %v792
        %v811 = vsub.f32 %v702, %v792
        %v812 = vsub.f32 %v705, %v792
        %v813 = vsub.f32 %v710, %v792
        %v814 = vsub.f32 %v713, %v792
        %v815 = vsub.f32 %v718, %v792
        %v816 = vsub.f32 %v721, %v792
        %v817 = vsub.f32 %v726, %v792
        %v818 = vsub.f32 %v729, %v792
        %v819 = vsub.f32 %v734, %v792
        %v820 = vsub.f32 %v737, %v792
        %v821 = vsub.f32 %v742, %v792
        %v822 = vsub.f32 %v745, %v792
        %v823 = vsub.f32 %v750, %v792
        %v824 = vsub.f32 %v753, %v792
        %v825 = vpack.c.bf16 %v794, %v793
        %v826 = vpack.c.bf16 %v796, %v795
        %v827 = vpack.c.bf16 %v798, %v797
        %v828 = vpack.c.bf16 %v800, %v799
        %v829 = vpack.c.bf16 %v802, %v801
        %v830 = vpack.c.bf16 %v804, %v803
        %v831 = vpack.c.bf16 %v806, %v805
        %v832 = vpack.c.bf16 %v808, %v807
        %v833 = vpack.c.bf16 %v810, %v809
        %v834 = vpack.c.bf16 %v812, %v811
        %v835 = vpack.c.bf16 %v814, %v813
        %v836 = vpack.c.bf16 %v816, %v815
        %v837 = vpack.c.bf16 %v818, %v817
        %v838 = vpack.c.bf16 %v820, %v819
        %v839 = vpack.c.bf16 %v822, %v821
        %v840 = vpack.c.bf16 %v824, %v823
        %v842 = vmul.bf16 %v825, 1069105081
        %v843 = vpow.bf16.pop %v842
        %v845 = vmul.bf16 %v826, 1069105081
        %v846 = vpow.bf16.pop %v845
        %v848 = vmul.bf16 %v827, 1069105081
        %v849 = vpow.bf16.pop %v848
        %v851 = vmul.bf16 %v828, 1069105081
        %v852 = vpow.bf16.pop %v851
        %v854 = vmul.bf16 %v829, 1069105081
        %v855 = vpow.bf16.pop %v854
        %v857 = vmul.bf16 %v830, 1069105081
        %v858 = vpow.bf16.pop %v857
        %v860 = vmul.bf16 %v831, 1069105081
        %v861 = vpow.bf16.pop %v860
        %v863 = vmul.bf16 %v832, 1069105081
        %v864 = vpow.bf16.pop %v863
        %v866 = vmul.bf16 %v833, 1069105081
        %v867 = vpow.bf16.pop %v866
        %v869 = vmul.bf16 %v834, 1069105081
        %v870 = vpow.bf16.pop %v869
        %v872 = vmul.bf16 %v835, 1069105081
        %v873 = vpow.bf16.pop %v872
        %v875 = vmul.bf16 %v836, 1069105081
        %v876 = vpow.bf16.pop %v875
        %v878 = vmul.bf16 %v837, 1069105081
        %v879 = vpow.bf16.pop %v878
        %v881 = vmul.bf16 %v838, 1069105081
        %v882 = vpow.bf16.pop %v881
        %v884 = vmul.bf16 %v839, 1069105081
        %v885 = vpow.bf16.pop %v884
        %v887 = vmul.bf16 %v840, 1069105081
        %v888 = vpow.bf16.pop %v887
        %v889 = vunpack.c.l.bf16 %v843
        %v890 = vunpack.c.h.bf16 %v843
        %v891 = vunpack.c.l.bf16 %v846
        %v892 = vunpack.c.h.bf16 %v846
        %v893 = vunpack.c.l.bf16 %v849
        %v894 = vunpack.c.h.bf16 %v849
        %v895 = vunpack.c.l.bf16 %v852
        %v896 = vunpack.c.h.bf16 %v852
        %v897 = vunpack.c.l.bf16 %v855
        %v898 = vunpack.c.h.bf16 %v855
        %v899 = vunpack.c.l.bf16 %v858
        %v900 = vunpack.c.h.bf16 %v858
        %v901 = vunpack.c.l.bf16 %v861
        %v902 = vunpack.c.h.bf16 %v861
        %v903 = vunpack.c.l.bf16 %v864
        %v904 = vunpack.c.h.bf16 %v864
        %v905 = vunpack.c.l.bf16 %v867
        %v906 = vunpack.c.h.bf16 %v867
        %v907 = vunpack.c.l.bf16 %v870
        %v908 = vunpack.c.h.bf16 %v870
        %v909 = vunpack.c.l.bf16 %v873
        %v910 = vunpack.c.h.bf16 %v873
        %v911 = vunpack.c.l.bf16 %v876
        %v912 = vunpack.c.h.bf16 %v876
        %v913 = vunpack.c.l.bf16 %v879
        %v914 = vunpack.c.h.bf16 %v879
        %v915 = vunpack.c.l.bf16 %v882
        %v916 = vunpack.c.h.bf16 %v882
        %v917 = vunpack.c.l.bf16 %v885
        %v918 = vunpack.c.h.bf16 %v885
        %v919 = vunpack.c.l.bf16 %v888
        %v920 = vunpack.c.h.bf16 %v888
        %v921 = vadd.f32 %v889, %v890
        %v922 = vadd.f32 %v921, %v891
        %v923 = vadd.f32 %v922, %v892
        %v924 = vadd.f32 %v923, %v893
        %v925 = vadd.f32 %v924, %v894
        %v926 = vadd.f32 %v925, %v895
        %v927 = vadd.f32 %v926, %v896
        %v928 = vadd.f32 %v927, %v897
        %v929 = vadd.f32 %v928, %v898
        %v930 = vadd.f32 %v929, %v899
        %v931 = vadd.f32 %v930, %v900
        %v932 = vadd.f32 %v931, %v901
        %v933 = vadd.f32 %v932, %v902
        %v934 = vadd.f32 %v933, %v903
        %v935 = vadd.f32 %v934, %v904
        %v936 = vadd.f32 %v935, %v905
        %v937 = vadd.f32 %v936, %v906
        %v938 = vadd.f32 %v937, %v907
        %v939 = vadd.f32 %v938, %v908
        %v940 = vadd.f32 %v939, %v909
        %v941 = vadd.f32 %v940, %v910
        %v942 = vadd.f32 %v941, %v911
        %v943 = vadd.f32 %v942, %v912
        %v944 = vadd.f32 %v943, %v913
        %v945 = vadd.f32 %v944, %v914
        %v946 = vadd.f32 %v945, %v915
        %v947 = vadd.f32 %v946, %v916
        %v948 = vadd.f32 %v947, %v917
        %v949 = vadd.f32 %v948, %v918
        %v950 = vadd.f32 %v949, %v919
        %v951 = vadd.f32 %v950, %v920
        %v952 = vrot.slane %v951, 4
        %v953 = vadd.f32 %v951, %v952
        %v954 = vrot.slane %v953, 2
        %v955 = vadd.f32 %v953, %v954
        %v956 = vrot.slane %v955, 1
        %v957 = vadd.f32 %v955, %v956
        %v958 = vld [vmem:[%s338] sm:$0xff]
        %v959 = vld [vmem:[%s338 + $0x8] sm:$0xff]
        %v960 = vld [vmem:[%s338 + $0x10] sm:$0xff]
        %v961 = vld [vmem:[%s338 + $0x18] sm:$0xff]
        %v966 = vunpack.c.l.b16 %v958
        %v967 = vunpack.c.h.b16 %v958
        %v968 = vunpack.c.l.b16 %v959
        %v969 = vunpack.c.h.b16 %v959
        %v970 = vunpack.c.l.b16 %v960
        %v971 = vunpack.c.h.b16 %v960
        %v972 = vunpack.c.l.b16 %v961
        %v973 = vunpack.c.h.b16 %v961
        %v974 = vpack.c.b16 %v968, %v966
        %v975 = vpack.c.b16 %v969, %v967
        %v976 = vpack.c.b16 %v972, %v970
        %v977 = vpack.c.b16 %v973, %v971
        %982 = vmatprep.subr.bf16.mxu0 0
        %983 = vmatpush1.bf16.msra.mxu0 %v843
        %984 = vmatprep.subr.bf16.mxu0 0
        %985 = vmatpush1.bf16.msra.mxu0 %v846
        %986 = vmatprep.subr.bf16.mxu0 0
        %987 = vmatpush1.bf16.msra.mxu0 %v849
        %988 = vmatprep.subr.bf16.mxu0 0
        %989 = vmatpush1.bf16.msra.mxu0 %v852
        %990 = vmatprep.subr.bf16.mxu0 0
        %991 = vmatpush1.bf16.msra.mxu0 %v855
        %992 = vmatprep.subr.bf16.mxu0 0
        %993 = vmatpush1.bf16.msra.mxu0 %v858
        %994 = vmatprep.subr.bf16.mxu0 0
        %995 = vmatpush1.bf16.msra.mxu0 %v861
        %996 = vmatprep.subr.bf16.mxu0 0
        %997 = vmatpush1.bf16.msra.mxu0 %v864
        %998 = vmatprep.subr.bf16.mxu0 0
        %999 = vmatpush1.bf16.msra.mxu0 %v867
        %1000 = vmatprep.subr.bf16.mxu0 0
        %1001 = vmatpush1.bf16.msra.mxu0 %v870
        %1002 = vmatprep.subr.bf16.mxu0 0
        %1003 = vmatpush1.bf16.msra.mxu0 %v873
        %1004 = vmatprep.subr.bf16.mxu0 0
        %1005 = vmatpush1.bf16.msra.mxu0 %v876
        %1006 = vmatprep.subr.bf16.mxu0 0
        %1007 = vmatpush1.bf16.msra.mxu0 %v879
        %1008 = vmatprep.subr.bf16.mxu0 0
        %1009 = vmatpush1.bf16.msra.mxu0 %v882
        %1010 = vmatprep.subr.bf16.mxu0 0
        %1011 = vmatpush1.bf16.msra.mxu0 %v885
        %1012 = vmatprep.subr.bf16.mxu0 0
        %1013 = vmatpush1.bf16.msra.mxu0 %v888
        %1014 = vmatprep.mubr.bf16.mxu0 %v975
        %1015 = vmatmul.mubr.bf16.gmra.mrb[0].mxu0 %v974
        %v1016 = vpop.f32.mrb[0].mxu0
        %v1017 = vadd.f32 0.0, %v1016
        %v1018 = vpop.f32.mrb[0].mxu0
        %v1019 = vpop.f32.mrb[0].mxu0
        %v1020 = vadd.f32 0.0, %v1019
        %v1021 = vpop.f32.mrb[0].mxu0
        %1022 = vmatprep.mubr.bf16.mxu0 %v977
        %1023 = vmatmul.mubr.bf16.gmra.mrb[0].mxu0 %v976
        %v1024 = vpop.f32.mrb[0].mxu0
        %v1025 = vadd.f32 0.0, %v1024
        %v1026 = vpop.f32.mrb[0].mxu0
        %v1027 = vpop.f32.mrb[0].mxu0
        %v1028 = vadd.f32 0.0, %v1027
        %v1029 = vpop.f32.mrb[0].mxu0
        %1030 = vdwg.mxu0
        %v1031 = vrcp.pop %v957
        %v1032 = vmul.f32 %v1017, %v1031
        %v1033 = vmul.f32 %v1020, %v1031
        %v1034 = vmul.f32 %v1025, %v1031
        %v1035 = vmul.f32 %v1028, %v1031
        %v1036 = vld [vmem:[%s5] sm:$0xf]
        %v1037 = vld [vmem:[%s5 + $0x4] sm:$0xf]
        %v1038 = vld [vmem:[%s5 + $0x8] sm:$0xf]
        %v1039 = vld [vmem:[%s5 + $0xc] sm:$0xf]
        %v1040 = vpack.c.bf16 %v1033, %v1032
        %v1041 = vpack.c.bf16 %v1035, %v1034
        %v1042 = vld [vmem:[%s6] sm:$0xff]
        %v1043 = vld [vmem:[%s6 + $0x8] sm:$0xff]
        %v1044 = vld [vmem:[%s6 + $0x10] sm:$0xff]
        %v1045 = vld [vmem:[%s6 + $0x18] sm:$0xff]
        %1047 = vset.pattern.permute.xlu0 0
        %1048 = vperm.xlu0 %1047, %v1042
        %v1049 = vpop.permute.xlu0 %1048
        %1052 = vset.pattern.permute.xlu0 0
        %1053 = vperm.xlu0 %1052, %v1043
        %v1054 = vpop.permute.xlu0 %1053
        %1057 = vset.pattern.permute.xlu0 0
        %1058 = vperm.xlu0 %1057, %v1044
        %v1059 = vpop.permute.xlu0 %1058
        %1062 = vset.pattern.permute.xlu0 0
        %1063 = vperm.xlu0 %1062, %v1045
        %v1064 = vpop.permute.xlu0 %1063
        %v1070 = vunpack.c.l.b16 %v1036
        %v1071 = vunpack.c.l.b16 %v1037
        %v1072 = vunpack.c.l.b16 %v1038
        %v1073 = vunpack.c.l.b16 %v1039
        %v1074 = vpack.c.b16 %v1071, %v1070
        %v1075 = vpack.c.b16 %v1073, %v1072
        %v1077 = vsel %vm433, %v1074, 0
        %v1080 = vsel %vm433, %v1075, 0
        %1082 = vmatprep.subr.bf16.mxu0 0
        %1083 = vmatpush1.bf16.msra.mxu0 %v1040
        %1084 = vmatprep.subr.bf16.mxu0 0
        %1085 = vmatpush1.bf16.msra.mxu0 %v1041
        %1086 = vmatprep.subr.bf16.mxu0 0
        %1087 = vmatpush1.bf16.msra.mxu0 0
        %1088 = vmatprep.subr.bf16.mxu0 0
        %1089 = vmatpush1.bf16.msra.mxu0 0
        %1090 = vmatprep.subr.bf16.mxu0 0
        %1091 = vmatpush1.bf16.msra.mxu0 0
        %1092 = vmatprep.subr.bf16.mxu0 0
        %1093 = vmatpush1.bf16.msra.mxu0 0
        %1094 = vmatprep.subr.bf16.mxu0 0
        %1095 = vmatpush1.bf16.msra.mxu0 0
        %1096 = vmatprep.subr.bf16.mxu0 0
        %1097 = vmatpush1.bf16.msra.mxu0 0
        %1098 = vmatprep.subr.bf16.mxu0 0
        %1099 = vmatpush1.bf16.msra.mxu0 0
        %1100 = vmatprep.subr.bf16.mxu0 0
        %1101 = vmatpush1.bf16.msra.mxu0 0
        %1102 = vmatprep.subr.bf16.mxu0 0
        %1103 = vmatpush1.bf16.msra.mxu0 0
        %1104 = vmatprep.subr.bf16.mxu0 0
        %1105 = vmatpush1.bf16.msra.mxu0 0
        %1106 = vmatprep.subr.bf16.mxu0 0
        %1107 = vmatpush1.bf16.msra.mxu0 0
        %1108 = vmatprep.subr.bf16.mxu0 0
        %1109 = vmatpush1.bf16.msra.mxu0 0
        %1110 = vmatprep.subr.bf16.mxu0 0
        %1111 = vmatpush1.bf16.msra.mxu0 0
        %1112 = vmatprep.subr.bf16.mxu0 0
        %1113 = vmatpush1.bf16.msra.mxu0 0
        %1114 = vmatprep.mubr.bf16.mxu0 0
        %1115 = vmatmul.mubr.bf16.gmra.mrb[0].mxu0 %v1077
        %v1116 = vpop.f32.mrb[0].mxu0
        %v1117 = vadd.f32 %v1049, %v1116
        %v1118 = vpop.f32.mrb[0].mxu0
        %v1119 = vpop.f32.mrb[0].mxu0
        %v1120 = vadd.f32 %v1054, %v1119
        %v1121 = vpop.f32.mrb[0].mxu0
        %1122 = vmatprep.mubr.bf16.mxu0 0
        %1123 = vmatmul.mubr.bf16.gmra.mrb[0].mxu0 %v1080
        %v1124 = vpop.f32.mrb[0].mxu0
        %v1125 = vadd.f32 %v1059, %v1124
        %v1126 = vpop.f32.mrb[0].mxu0
        %v1127 = vpop.f32.mrb[0].mxu0
        %v1128 = vadd.f32 %v1064, %v1127
        %v1129 = vpop.f32.mrb[0].mxu0
        %1130 = vdwg.mxu0
        %v1131 = vadd.f32 %v389, %v1117
        %v1132 = vadd.f32 %v390, %v1120
        %v1133 = vadd.f32 %v391, %v1125
        %v1134 = vadd.f32 %v392, %v1128
        %1135 = vst [vmem:[%s382] sm:$0xff] %v1131
        %1136 = vst [vmem:[%s382 + $0x8] sm:$0xff] %v1132
        %1137 = vst [vmem:[%s382 + $0x10] sm:$0xff] %v1133
        %1138 = vst [vmem:[%s382 + $0x18] sm:$0xff] %v1134
        %s1139 = sand.u32 %s213, 1
        %s1140 = scalar_lea.sflag [#allocation4], %s1139
        %s1141 = sand.u32 %s213, 1
        %s1142 = smul.addr %s1141, 32
        %s1143 = scalar_lea.vmem [#allocation8], %s1142
        // Predicated region
        $region61: #{tpu_custom_call.1} parent=47 // pred_check
          %p1144 = pneg %p223
        $region62: #{tpu_custom_call.1} parent=47 // pred_check_branch
          %1146 = sbr.rel (%p1144) target = $region64
        $region63: #{tpu_custom_call.1} parent=47 // pred_region
          %s1148 = ssub.s32 512, 512
          %1149 = vsyncadd %s1140, %s1148
          %s1150 = smul.addr %s31, 8
          %s1151 = sadd.s32 %s32, %s1150
          %s1152 = smul.addr %s1151, 128
          %s1153 = scalar_lea.hbm %s7, %s1152
          %s1154 = sshll.u32 %s1143, 4
          %s1155 = int_to_ptr.vmem [resolvable:$true] %s1154
          %1160 = dma.vmem_to_hbm [thread:$0]  %s1155, 512, %s1153, %s1140, 128, 256, 8
        $region64: #{tpu_custom_call.1} parent=47 // pred_fallthru
          _
      $region48: #{tpu_custom_call.1} parent=5 // pred_fallthru
        _
      %p1161 = scmp.le.s32.totalorder 2, %s22
      // Predicated region
      $region65: #{tpu_custom_call.1} parent=5 // pred_check
        %p1162 = pneg %p1161
      $region66: #{tpu_custom_call.1} parent=5 // pred_check_branch
        %1164 = sbr.rel (%p1162) target = $region68
      $region67: #{tpu_custom_call.1} parent=5 // pred_region
        %s1165 = ssub.s32 %s22, 2
        // Predicated region
        $region69: #{tpu_custom_call.1} parent=67 // pred_check
          %p1166 = pneg %p229
        $region70: #{tpu_custom_call.1} parent=67 // pred_check_branch
          %1168 = sbr.rel (%p1166) target = $region72
        $region71: #{tpu_custom_call.1} parent=67 // pred_region
          %s1169 = sand.u32 %s214, 1
          %s1170 = scalar_lea.sflag [#allocation4], %s1169
          %s1171 = sand.u32 %s214, 1
          %s1172 = smul.addr %s1171, 32
          %s1173 = scalar_lea.vmem [#allocation8], %s1172
          %1174 = dma.done %s1170, 512
        $region72: #{tpu_custom_call.1} parent=67 // pred_fallthru
          _
      $region68: #{tpu_custom_call.1} parent=5 // pred_fallthru
        _
    $region6: #{tpu_custom_call.1} parent=1 // loop_footer
      %s26 = sadd.s32 1, %s22
    $region7: #{tpu_custom_call.1} parent=1 // loop_footer_branch
      %21 = sbr.rel target = $region3
    $region8: #{tpu_custom_call.1} parent=1 // loop_exit
      _
    %1175 = vsyncpa [#allocation3], 1
    %s1176 = scalar_lea.sflag [#allocation3], 1
    %1177 = vsyncpa %s1176, 1
    %1178 = vsyncpa [#allocation6], 1
    %s1179 = scalar_lea.sflag [#allocation6], 1
    %1180 = vsyncpa %s1179, 1
    %1181 = vsyncpa [#allocation4], 1
    %s1182 = scalar_lea.sflag [#allocation4], 1
    %1183 = vsyncpa %s1182, 1

</llo_original>
